<compile_context>
chip_gen: v7x
topology: tpu7x:2x2x1
jax: 0.10.0
libtpu: 0.0.40
codegen_flags: <defaults>
</compile_context>

<pallas_src>
import jax
import jax.numpy as jnp
from jax.experimental import pallas as pl
from jax.experimental.pallas import tpu as pltpu

HIDDEN = 256  # fc1/fc2 width (from the PyTorch module)


def _round_up(n, m):
    return ((n + m - 1) // m) * m


def _choose_tiling(batch, tile_b, sublane):
    """Pick a sublane-aligned batch tile that minimizes last-tile padding."""
    tile_b = max(sublane, min(int(tile_b), _round_up(batch, sublane)))
    nb = -(-batch // tile_b)                       # number of tiles
    tile_b = _round_up(-(-batch // nb), sublane)   # even split, aligned
    return nb, tile_b, nb * tile_b


# ----------------------------------------------------------------------------
# Kernel: one (network, batch-tile) grid point.  Parameter refs carry a
# leading size-1 "network" axis selected by the index_map; their block index
# is constant along the inner (batch) grid axis -> fetched once per network.
# ----------------------------------------------------------------------------
def softq_kernel(xa_ref, w1_ref, b1_ref, w2_ref, b2_ref, w3_ref, b3_ref,
                 out_ref):
    xa = xa_ref[...]                                     # (TB, in_dim)

    # fc1 + ReLU (f32 MXU accumulation, f32 bias/ReLU)
    h1 = jnp.dot(xa, w1_ref[0], preferred_element_type=jnp.float32) + b1_ref[0]
    h1 = jnp.maximum(h1, 0.0).astype(w2_ref.dtype)

    # fc2 + ReLU
    h2 = jnp.dot(h1, w2_ref[0], preferred_element_type=jnp.float32) + b2_ref[0]
    h2 = jnp.maximum(h2, 0.0)                            # (TB, HIDDEN) f32

    # fc3 (width 1): VPU multiply with the weight row + lane reduction.
    # Output last dim is 1 == full array dim -> no padded writeback.
    q = jnp.sum(h2 * w3_ref[0].astype(jnp.float32), axis=-1, keepdims=True)
    out_ref[0] = (q + b3_ref[0]).astype(out_ref.dtype)   # (TB, 1)


# ----------------------------------------------------------------------------
# Parameter preparation: stack N critics, fc3 weight stored as a row.
# ----------------------------------------------------------------------------
def prep_stacked_params(params_list, compute_dtype=jnp.bfloat16):
    """params_list: list of (w1, b1, w2, b2, w3, b3); weights stored (in, out)."""
    w1 = jnp.stack([p[0] for p in params_list]).astype(compute_dtype)   # (n,in,H)
    b1 = jnp.stack([p[1] for p in params_list]).astype(jnp.float32)     # (n,1,H)
    w2 = jnp.stack([p[2] for p in params_list]).astype(compute_dtype)   # (n,H,H)
    b2 = jnp.stack([p[3] for p in params_list]).astype(jnp.float32)     # (n,1,H)
    w3 = jnp.stack([p[4] for p in params_list])                         # (n,H,1)
    b3 = jnp.stack([p[5] for p in params_list]).astype(jnp.float32)     # (n,1,1)
    w3r = jnp.swapaxes(w3, 1, 2).astype(compute_dtype)                  # (n,1,H)
    return w1, b1, w2, b2, w3r, b3


# ----------------------------------------------------------------------------
# Gridded forward over (networks, batch tiles); both "parallel".
# ----------------------------------------------------------------------------
def softq_forward_stacked(x, a, stacked, *, tile_b=2048):
    w1, b1, w2, b2, w3r, b3 = stacked
    n_nets, in_dim, _ = w1.shape
    cdtype = w1.dtype
    B = x.shape[0]

    # Wrapper-side concat (fuses into the input copy; no in-kernel shuffles).
    xa = jnp.concatenate([x, a], axis=1).astype(cdtype)  # (B, in_dim)
    assert xa.shape[1] == in_dim

    sublane = 16 if cdtype == jnp.bfloat16 else 8
    nb, tile_b, Bp = _choose_tiling(B, tile_b, sublane)
    if Bp != B:
        xa = jnp.pad(xa, ((0, Bp - B), (0, 0)))

    flops = 2 * n_nets * Bp * (in_dim * HIDDEN + HIDDEN * HIDDEN + HIDDEN)
    bytes_accessed = (
        Bp * in_dim * xa.dtype.itemsize
        + sum(int(p.size) * p.dtype.itemsize for p in stacked)
        + n_nets * Bp * 4)

    out = pl.pallas_call(
        softq_kernel,
        out_shape=jax.ShapeDtypeStruct((n_nets, Bp, 1), jnp.float32),
        grid=(n_nets, nb),
        in_specs=[
            pl.BlockSpec((tile_b, in_dim), lambda n, i: (i, 0)),
            pl.BlockSpec((1, in_dim, HIDDEN), lambda n, i: (n, 0, 0)),
            pl.BlockSpec((1, 1, HIDDEN), lambda n, i: (n, 0, 0)),
            pl.BlockSpec((1, HIDDEN, HIDDEN), lambda n, i: (n, 0, 0)),
            pl.BlockSpec((1, 1, HIDDEN), lambda n, i: (n, 0, 0)),
            pl.BlockSpec((1, 1, HIDDEN), lambda n, i: (n, 0, 0)),
            pl.BlockSpec((1, 1, 1), lambda n, i: (n, 0, 0)),
        ],
        out_specs=pl.BlockSpec((1, tile_b, 1), lambda n, i: (n, i, 0)),
        compiler_params=pltpu.CompilerParams(
            dimension_semantics=("parallel", "parallel")),
        cost_estimate=pl.CostEstimate(
            flops=flops, transcendentals=0, bytes_accessed=bytes_accessed),
    )(xa, w1, b1, w2, b2, w3r, b3)

    return out[:, :B, :] if Bp != B else out


def softq_forward(x, a, params, *, tile_b=2048, compute_dtype=jnp.bfloat16):
    """Single critic: matches SoftQNetwork.forward(x, a) -> (B, 1)."""
    stacked = prep_stacked_params([params], compute_dtype)
    return softq_forward_stacked(x, a, stacked, tile_b=tile_b)[0]


def twin_softq_forward(x, a, params1, params2, *, tile_b=2048,
                       compute_dtype=jnp.bfloat16):
    """Fused SAC critic pair (qf1, qf2) in ONE pallas_call."""
    stacked = prep_stacked_params([params1, params2], compute_dtype)
    out = softq_forward_stacked(x, a, stacked, tile_b=tile_b)
    return out[0], out[1]


# ----------------------------------------------------------------------------
# Init + pure-JAX reference
# ----------------------------------------------------------------------------
def init_params(key, obs_dim, act_dim, hidden=HIDDEN):
    """torch.nn.Linear-style init; weights stored transposed (in, out)."""
    in_dim = obs_dim + act_dim
    dims = [(in_dim, hidden), (hidden, hidden), (hidden, 1)]
    params = []
    for fan_in, fan_out in dims:
        key, kw, kb = jax.random.split(key, 3)
        bound = 1.0 / jnp.sqrt(jnp.asarray(fan_in, jnp.float32))
        w = jax.random.uniform(kw, (fan_in, fan_out), jnp.float32, -bound, bound)
        b = jax.random.uniform(kb, (1, fan_out), jnp.float32, -bound, bound)
        params += [w, b]
    return tuple(params)


def reference_forward(x, a, params):
    w1, b1, w2, b2, w3, b3 = params
    xa = jnp.concatenate([x, a], axis=1)
    h1 = jnp.maximum(xa @ w1 + b1, 0.0)
    h2 = jnp.maximum(h1 @ w2 + b2, 0.0)
    return h2 @ w3 + b3


if __name__ == "__main__":
    key = jax.random.PRNGKey(0)
    B, OBS_DIM, ACT_DIM = 32, 8, 4

    key, kx, ka, kp1, kp2 = jax.random.split(key, 5)
    x = jax.random.normal(kx, (B, OBS_DIM), jnp.float32)
    a = jax.random.normal(ka, (B, ACT_DIM), jnp.float32)
    params1 = init_params(kp1, OBS_DIM, ACT_DIM)
    params2 = init_params(kp2, OBS_DIM, ACT_DIM)

    ref1 = reference_forward(x, a, params1)
    ref2 = reference_forward(x, a, params2)

    # Single critic, f32 compute — strict check vs pure-JAX reference.
    q = jax.block_until_ready(
        softq_forward(x, a, params1, compute_dtype=jnp.float32))
    assert q.shape == (B, 1), q.shape
    assert jnp.allclose(q, ref1, atol=1e-4, rtol=1e-4)

    # Fused twin critic (qf1 + qf2 in one pallas_call), f32 compute.
    q1, q2 = twin_softq_forward(x, a, params1, params2,
                                compute_dtype=jnp.float32)
    q1, q2 = jax.block_until_ready((q1, q2))
    assert jnp.allclose(q1, ref1, atol=1e-4, rtol=1e-4)
    assert jnp.allclose(q2, ref2, atol=1e-4, rtol=1e-4)

    # Default bf16 weights/activations (f32 accumulation) — loose tolerance.
    qb = jax.block_until_ready(softq_forward(x, a, params1))
    assert jnp.allclose(qb, ref1, atol=5e-2, rtol=5e-2)

    print("KERNEL_OK")
</pallas_src>

<mosaic_0001>
module attributes {stable_mosaic.version = 11 : i64} {
  func.func @softq_kernel(%arg0: i32, %arg1: i32, %arg2: memref<32x12xf32, #tpu.memory_space<vmem>>, %arg3: memref<1x12x256xf32, #tpu.memory_space<vmem>>, %arg4: memref<1x1x256xf32, #tpu.memory_space<vmem>>, %arg5: memref<1x256x256xf32, #tpu.memory_space<vmem>>, %arg6: memref<1x1x256xf32, #tpu.memory_space<vmem>>, %arg7: memref<1x1x256xf32, #tpu.memory_space<vmem>>, %arg8: memref<1x1x1xf32, #tpu.memory_space<vmem>>, %arg9: memref<1x32x1xf32, #tpu.memory_space<vmem>>) attributes {dimension_semantics = [#tpu.dimension_semantics<parallel>, #tpu.dimension_semantics<parallel>], iteration_bounds = array<i64: 1, 1>, scalar_prefetch = 0 : i64, scratch_operands = 0 : i64, tpu.core_type = #tpu.core_type<tc>, window_params = [{transform_indices = @transform_0, window_bounds = array<i64: 32, 12>}, {transform_indices = @transform_1, window_bounds = array<i64: 1, 12, 256>}, {transform_indices = @transform_2, window_bounds = array<i64: 1, 1, 256>}, {transform_indices = @transform_3, window_bounds = array<i64: 1, 256, 256>}, {transform_indices = @transform_4, window_bounds = array<i64: 1, 1, 256>}, {transform_indices = @transform_5, window_bounds = array<i64: 1, 1, 256>}, {transform_indices = @transform_6, window_bounds = array<i64: 1, 1, 1>}, {transform_indices = @transform_7, window_bounds = array<i64: 1, 32, 1>}]} {
    %c0 = arith.constant 0 : index
    %c0_0 = arith.constant 0 : index
    %0 = vector.load %arg2[%c0, %c0_0] : memref<32x12xf32, #tpu.memory_space<vmem>>, vector<32x12xf32>
    %c0_1 = arith.constant 0 : index
    %c0_2 = arith.constant 0 : index
    %c0_3 = arith.constant 0 : index
    %1 = vector.load %arg3[%c0_1, %c0_2, %c0_3] : memref<1x12x256xf32, #tpu.memory_space<vmem>>, vector<1x12x256xf32>
    %2 = vector.shape_cast %1 : vector<1x12x256xf32> to vector<12x256xf32>
    %cst = arith.constant dense<0.000000e+00> : vector<32x256xf32>
    %3 = tpu.matmul %0, %2, %cst {dimension_numbers = #tpu.dot_dimension_numbers<[1], [0], [0], [1], [0, 0, 1, 1], [], []>} : vector<32x12xf32>, vector<12x256xf32>, vector<32x256xf32> -> vector<32x256xf32>
    %c0_4 = arith.constant 0 : index
    %c0_5 = arith.constant 0 : index
    %c0_6 = arith.constant 0 : index
    %4 = vector.load %arg4[%c0_4, %c0_5, %c0_6] : memref<1x1x256xf32, #tpu.memory_space<vmem>>, vector<1x1x256xf32>
    %5 = vector.shape_cast %4 : vector<1x1x256xf32> to vector<1x256xf32>
    %6 = vector.broadcast %5 : vector<1x256xf32> to vector<32x256xf32>
    %7 = arith.addf %3, %6 : vector<32x256xf32>
    %cst_7 = arith.constant 0.000000e+00 : f32
    %8 = vector.broadcast %cst_7 : f32 to vector<32x256xf32>
    %9 = arith.maximumf %7, %8 : vector<32x256xf32>
    %c0_8 = arith.constant 0 : index
    %c0_9 = arith.constant 0 : index
    %c0_10 = arith.constant 0 : index
    %10 = vector.load %arg5[%c0_8, %c0_9, %c0_10] : memref<1x256x256xf32, #tpu.memory_space<vmem>>, vector<1x256x256xf32>
    %11 = vector.shape_cast %10 : vector<1x256x256xf32> to vector<256x256xf32>
    %cst_11 = arith.constant dense<0.000000e+00> : vector<32x256xf32>
    %12 = tpu.matmul %9, %11, %cst_11 {dimension_numbers = #tpu.dot_dimension_numbers<[1], [0], [0], [1], [0, 0, 1, 1], [], []>} : vector<32x256xf32>, vector<256x256xf32>, vector<32x256xf32> -> vector<32x256xf32>
    %c0_12 = arith.constant 0 : index
    %c0_13 = arith.constant 0 : index
    %c0_14 = arith.constant 0 : index
    %13 = vector.load %arg6[%c0_12, %c0_13, %c0_14] : memref<1x1x256xf32, #tpu.memory_space<vmem>>, vector<1x1x256xf32>
    %14 = vector.shape_cast %13 : vector<1x1x256xf32> to vector<1x256xf32>
    %15 = vector.broadcast %14 : vector<1x256xf32> to vector<32x256xf32>
    %16 = arith.addf %12, %15 : vector<32x256xf32>
    %cst_15 = arith.constant 0.000000e+00 : f32
    %17 = vector.broadcast %cst_15 : f32 to vector<32x256xf32>
    %18 = arith.maximumf %16, %17 : vector<32x256xf32>
    %c0_16 = arith.constant 0 : index
    %c0_17 = arith.constant 0 : index
    %c0_18 = arith.constant 0 : index
    %19 = vector.load %arg7[%c0_16, %c0_17, %c0_18] : memref<1x1x256xf32, #tpu.memory_space<vmem>>, vector<1x1x256xf32>
    %20 = vector.shape_cast %19 : vector<1x1x256xf32> to vector<1x256xf32>
    %21 = vector.broadcast %20 : vector<1x256xf32> to vector<32x256xf32>
    %22 = arith.mulf %18, %21 : vector<32x256xf32>
    %cst_19 = arith.constant dense<0.000000e+00> : vector<32xf32>
    %23 = vector.multi_reduction <add>, %22, %cst_19 [1] : vector<32x256xf32> to vector<32xf32>
    %24 = vector.shape_cast %23 : vector<32xf32> to vector<32x1xf32>
    %c0_20 = arith.constant 0 : index
    %c0_21 = arith.constant 0 : index
    %c0_22 = arith.constant 0 : index
    %25 = vector.load %arg8[%c0_20, %c0_21, %c0_22] : memref<1x1x1xf32, #tpu.memory_space<vmem>>, vector<1x1x1xf32>
    %26 = vector.shape_cast %25 : vector<1x1x1xf32> to vector<1x1xf32>
    %27 = vector.broadcast %26 : vector<1x1xf32> to vector<32x1xf32>
    %28 = arith.addf %24, %27 : vector<32x1xf32>
    %c0_23 = arith.constant 0 : index
    %c0_24 = arith.constant 0 : index
    %c0_25 = arith.constant 0 : index
    %29 = vector.load %arg9[%c0_23, %c0_24, %c0_25] : memref<1x32x1xf32, #tpu.memory_space<vmem>>, vector<1x32x1xf32>
    %30 = vector.shape_cast %29 : vector<1x32x1xf32> to vector<32x1xf32>
    %31 = vector.shape_cast %28 : vector<32x1xf32> to vector<1x32x1xf32>
    tpu.vector_store %arg9[%c0_23, %c0_24, %c0_25], %31 {strides = array<i32>} : memref<1x32x1xf32, #tpu.memory_space<vmem>>, vector<1x32x1xf32>,
    return
  }
  func.func @transform_0(%arg0: i32, %arg1: i32) -> (i32, i32) {
    %c0_i32 = arith.constant 0 : i32
    %c0_i32_0 = arith.constant 0 : i32
    return %arg1, %c0_i32 : i32, i32
  }
  func.func @transform_1(%arg0: i32, %arg1: i32) -> (i32, i32, i32) {
    %c0_i32 = arith.constant 0 : i32
    %c0_i32_0 = arith.constant 0 : i32
    %c0_i32_1 = arith.constant 0 : i32
    return %arg0, %c0_i32, %c0_i32_0 : i32, i32, i32
  }
  func.func @transform_2(%arg0: i32, %arg1: i32) -> (i32, i32, i32) {
    %c0_i32 = arith.constant 0 : i32
    %c0_i32_0 = arith.constant 0 : i32
    %c0_i32_1 = arith.constant 0 : i32
    return %arg0, %c0_i32, %c0_i32_0 : i32, i32, i32
  }
  func.func @transform_3(%arg0: i32, %arg1: i32) -> (i32, i32, i32) {
    %c0_i32 = arith.constant 0 : i32
    %c0_i32_0 = arith.constant 0 : i32
    %c0_i32_1 = arith.constant 0 : i32
    return %arg0, %c0_i32, %c0_i32_0 : i32, i32, i32
  }
  func.func @transform_4(%arg0: i32, %arg1: i32) -> (i32, i32, i32) {
    %c0_i32 = arith.constant 0 : i32
    %c0_i32_0 = arith.constant 0 : i32
    %c0_i32_1 = arith.constant 0 : i32
    return %arg0, %c0_i32, %c0_i32_0 : i32, i32, i32
  }
  func.func @transform_5(%arg0: i32, %arg1: i32) -> (i32, i32, i32) {
    %c0_i32 = arith.constant 0 : i32
    %c0_i32_0 = arith.constant 0 : i32
    %c0_i32_1 = arith.constant 0 : i32
    return %arg0, %c0_i32, %c0_i32_0 : i32, i32, i32
  }
  func.func @transform_6(%arg0: i32, %arg1: i32) -> (i32, i32, i32) {
    %c0_i32 = arith.constant 0 : i32
    %c0_i32_0 = arith.constant 0 : i32
    %c0_i32_1 = arith.constant 0 : i32
    return %arg0, %c0_i32, %c0_i32_0 : i32, i32, i32
  }
  func.func @transform_7(%arg0: i32, %arg1: i32) -> (i32, i32, i32) {
    %c0_i32 = arith.constant 0 : i32
    %c0_i32_0 = arith.constant 0 : i32
    return %arg0, %arg1, %c0_i32 : i32, i32, i32
  }
}

</mosaic_0001>

<llo_original>
// kernel: tpu_custom_call.1
$region0: #{tpu_custom_call.1}
  #allocation0 [shape = 'u32[]', space=smem, size = 0x4, offset = 0x4, fixed_abs, tag = 'smem constant byte address 0x4 - core index']
  #allocation1 [shape = 'u32[144,128]{1,0:T(1,128)}', space=vmem, size = 0x12000, scoped, tag = 'internal scratch']
  #allocation2 [shape = 'f32[1,1,1]{2,1,0:T(1,128)S(1)}', space=vmem, size = 0x200, scoped, tag = 'scoped memory for tpu_custom_call.1']
  %s0 = inlined_call_operand.vmem [shape: f32[32,12], index: 0, kind: input, shape index: {}]
  %s1 = inlined_call_operand.vmem [shape: f32[1,12,256], index: 1, kind: input, shape index: {}]
  %s2 = inlined_call_operand.vmem [shape: f32[1,1,256], index: 2, kind: input, shape index: {}]
  %s3 = inlined_call_operand.hbm [shape: f32[1,256,256], index: 3, kind: input, shape index: {}]
  %s4 = inlined_call_operand.vmem [shape: f32[1,1,256], index: 4, kind: input, shape index: {}]
  %s5 = inlined_call_operand.vmem [shape: f32[1,1,256], index: 5, kind: input, shape index: {}]
  %s6 = inlined_call_operand.<no memory space> [shape: f32[1,1,1], index: 6, kind: input, shape index: {}]
  %s7 = inlined_call_operand.vmem [shape: f32[1,32,1], index: 7, kind: output, shape index: {}]
  %s8 = sld [smem:[#allocation0]]
  $region42: #{tpu_custom_call.1} parent=0
    _
  %s10 = ssub.s32 1, %s8
  %s11 = scalar_select 0, %s10, %s8
  %v12 = vstv %s6
  %13 = vst [vmem:[#allocation2] sm:$0x1] %v12
  $region1: #{tpu_custom_call.1} parent=0
    #allocation3 [shape = 'u8[262144]{0}', space=vmem, size = 0x40000, scoped, tag = 'input window, operand 3, single buffered']
    #allocation4 [shape = 's32[1]{0}', space=sflag, size = 0x4, scoped, tag = 'scoped memory for tpu_custom_call.1']
    %14 = vsyncpa [#allocation4], 0
    // Predicated region
    $region2: #{tpu_custom_call.1} parent=1 // pred_check
      _
    $region3: #{tpu_custom_call.1} parent=1 // pred_check_branch
      %16 = sbr.rel (0) target = $region5
    $region4: #{tpu_custom_call.1} parent=1 // pred_region
      _
    $region5: #{tpu_custom_call.1} parent=1 // pred_fallthru
      _
    // Predicated region
    $region6: #{tpu_custom_call.1} parent=1 // pred_check
      _
    $region7: #{tpu_custom_call.1} parent=1 // pred_check_branch
      %18 = sbr.rel (0) target = $region9
    $region8: #{tpu_custom_call.1} parent=1 // pred_region
      _
    $region9: #{tpu_custom_call.1} parent=1 // pred_fallthru
      _
    // Predicated region
    $region10: #{tpu_custom_call.1} parent=1 // pred_check
      _
    $region11: #{tpu_custom_call.1} parent=1 // pred_check_branch
      %20 = sbr.rel (0) target = $region13
    $region12: #{tpu_custom_call.1} parent=1 // pred_region
      _
    $region13: #{tpu_custom_call.1} parent=1 // pred_fallthru
      _
    // Predicated region
    $region14: #{tpu_custom_call.1} parent=1 // pred_check
      _
    $region15: #{tpu_custom_call.1} parent=1 // pred_check_branch
      %22 = sbr.rel (0) target = $region17
    $region16: #{tpu_custom_call.1} parent=1 // pred_region
      %s24 = ssub.s32 8192, 8192
      %25 = vsyncadd [#allocation4], %s24
      %s26 = sshll.u32 [#allocation3], 4
      %s27 = int_to_ptr.vmem [resolvable:$true] %s26
      %32 = dma.hbm_to_vmem [thread:$0]  %s3, 8192, %s27, [#allocation4], 256, 256, 16
    $region17: #{tpu_custom_call.1} parent=1 // pred_fallthru
      _
    // Predicated region
    $region18: #{tpu_custom_call.1} parent=1 // pred_check
      _
    $region19: #{tpu_custom_call.1} parent=1 // pred_check_branch
      %34 = sbr.rel (0) target = $region21
    $region20: #{tpu_custom_call.1} parent=1 // pred_region
      _
    $region21: #{tpu_custom_call.1} parent=1 // pred_fallthru
      _
    // Predicated region
    $region22: #{tpu_custom_call.1} parent=1 // pred_check
      _
    $region23: #{tpu_custom_call.1} parent=1 // pred_check_branch
      %36 = sbr.rel (0) target = $region25
    $region24: #{tpu_custom_call.1} parent=1 // pred_region
      _
    $region25: #{tpu_custom_call.1} parent=1 // pred_fallthru
      _
    // Predicated region
    $region26: #{tpu_custom_call.1} parent=1 // pred_check
      _
    $region27: #{tpu_custom_call.1} parent=1 // pred_check_branch
      %38 = sbr.rel (0) target = $region29
    $region28: #{tpu_custom_call.1} parent=1 // pred_region
      _
    $region29: #{tpu_custom_call.1} parent=1 // pred_fallthru
      _
    // Predicated region
    $region30: #{tpu_custom_call.1} parent=1 // pred_check
      _
    $region31: #{tpu_custom_call.1} parent=1 // pred_check_branch
      %40 = sbr.rel (0) target = $region33
    $region32: #{tpu_custom_call.1} parent=1 // pred_region
      %41 = dma.done [#allocation4], 8192
    $region33: #{tpu_custom_call.1} parent=1 // pred_fallthru
      _
    %v42 = vld [vmem:[%s0] sm:$0xff]
    %v43 = vld [vmem:[%s0 + $0x8] sm:$0xff]
    %v44 = vld [vmem:[%s0 + $0x10] sm:$0xff]
    %v45 = vld [vmem:[%s0 + $0x18] sm:$0xff]
    %v46 = vld [vmem:[%s1] sm:$0xff]
    %v47 = vld [vmem:[%s1 + $0x8] sm:$0xff]
    %v48 = vld [vmem:[%s1 + $0x10] sm:$0xf]
    %v49 = vld [vmem:[%s1 + $0x18] sm:$0xf]
    %v50 = vld [vmem:[%s2] sm:$0x3]
    %v52 = vlaneseq
    %v53 = vshrl.u32 %v52, 7
    %v54 = vsub.s32 0, %v53
    %v55 = vrot.slane %v50, %v54
    %v56 = vlaneseq
    %v57 = vshrl.u32 %v56, 7
    %v58 = vsub.s32 1, %v57
    %v59 = vrot.slane %v50, %v58
    %vm62 = vcmask 97280
    %v64 = vsel %vm62, %v42, 0
    %v67 = vsel %vm62, %v43, 0
    %v70 = vsel %vm62, %v44, 0
    %v73 = vsel %vm62, %v45, 0
    %vm75 = vcmask 1043456
    %v77 = vsel %vm75, %v48, 0
    %v80 = vsel %vm75, %v49, 0
    %82 = vmatprep.subr.mxu0 %v47
    %83 = vmatpush1.msra.mxu0 %v46
    %84 = vmatprep.subr.mxu0 %v80
    %85 = vmatpush1.msra.mxu0 %v77
    %86 = vmatprep.subr.mxu0 0.0
    %87 = vmatpush1.msra.mxu0 0.0
    %88 = vmatprep.subr.mxu0 0.0
    %89 = vmatpush1.msra.mxu0 0.0
    %90 = vmatprep.subr.mxu0 0.0
    %91 = vmatpush1.msra.mxu0 0.0
    %92 = vmatprep.subr.mxu0 0.0
    %93 = vmatpush1.msra.mxu0 0.0
    %94 = vmatprep.subr.mxu0 0.0
    %95 = vmatpush1.msra.mxu0 0.0
    %96 = vmatprep.subr.mxu0 0.0
    %97 = vmatpush1.msra.mxu0 0.0
    %98 = vmatprep.subr.mxu0 0.0
    %99 = vmatpush1.msra.mxu0 0.0
    %100 = vmatprep.subr.mxu0 0.0
    %101 = vmatpush1.msra.mxu0 0.0
    %102 = vmatprep.subr.mxu0 0.0
    %103 = vmatpush1.msra.mxu0 0.0
    %104 = vmatprep.subr.mxu0 0.0
    %105 = vmatpush1.msra.mxu0 0.0
    %106 = vmatprep.subr.mxu0 0.0
    %107 = vmatpush1.msra.mxu0 0.0
    %108 = vmatprep.subr.mxu0 0.0
    %109 = vmatpush1.msra.mxu0 0.0
    %110 = vmatprep.subr.mxu0 0.0
    %111 = vmatpush1.msra.mxu0 0.0
    %112 = vmatprep.subr.mxu0 0.0
    %113 = vmatpush1.msra.mxu0 0.0
    %114 = vmatprep.subr.mxu0 0.0
    %115 = vmatpush1.msra.mxu0 0.0
    %116 = vmatprep.subr.mxu0 0.0
    %117 = vmatpush1.msra.mxu0 0.0
    %118 = vmatprep.subr.mxu0 0.0
    %119 = vmatpush1.msra.mxu0 0.0
    %120 = vmatprep.subr.mxu0 0.0
    %121 = vmatpush1.msra.mxu0 0.0
    %122 = vmatprep.subr.mxu0 0.0
    %123 = vmatpush1.msra.mxu0 0.0
    %124 = vmatprep.subr.mxu0 0.0
    %125 = vmatpush1.msra.mxu0 0.0
    %126 = vmatprep.subr.mxu0 0.0
    %127 = vmatpush1.msra.mxu0 0.0
    %128 = vmatprep.subr.mxu0 0.0
    %129 = vmatpush1.msra.mxu0 0.0
    %130 = vmatprep.subr.mxu0 0.0
    %131 = vmatpush1.msra.mxu0 0.0
    %132 = vmatprep.subr.mxu0 0.0
    %133 = vmatpush1.msra.mxu0 0.0
    %134 = vmatprep.subr.mxu0 0.0
    %135 = vmatpush1.msra.mxu0 0.0
    %136 = vmatprep.subr.mxu0 0.0
    %137 = vmatpush1.msra.mxu0 0.0
    %138 = vmatprep.subr.mxu0 0.0
    %139 = vmatpush1.msra.mxu0 0.0
    %140 = vmatprep.subr.mxu0 0.0
    %141 = vmatpush1.msra.mxu0 0.0
    %142 = vmatprep.subr.mxu0 0.0
    %143 = vmatpush1.msra.mxu0 0.0
    %144 = vmatprep.subr.mxu0 0.0
    %145 = vmatpush1.msra.mxu0 0.0
    %146 = vmatprep.mubr.f32.mxu0 0.0
    %147 = vmatmul.mubr.f32.gmra.mrb[0].mxu0 %v64
    %v148 = vpop.f32.mrb[0].mxu0
    %v149 = vadd.f32 %v55, %v148
    %v150 = vpop.f32.mrb[0].mxu0
    %v151 = vadd.f32 %v59, %v150
    %152 = vmatprep.mubr.f32.mxu0 0.0
    %153 = vmatmul.mubr.f32.gmra.mrb[0].mxu0 %v67
    %v154 = vpop.f32.mrb[0].mxu0
    %v155 = vadd.f32 %v55, %v154
    %v156 = vpop.f32.mrb[0].mxu0
    %v157 = vadd.f32 %v59, %v156
    %158 = vmatprep.mubr.f32.mxu0 0.0
    %159 = vmatmul.mubr.f32.gmra.mrb[0].mxu0 %v70
    %v160 = vpop.f32.mrb[0].mxu0
    %v161 = vadd.f32 %v55, %v160
    %v162 = vpop.f32.mrb[0].mxu0
    %v163 = vadd.f32 %v59, %v162
    %164 = vmatprep.mubr.f32.mxu0 0.0
    %165 = vmatmul.mubr.f32.gmra.mrb[0].mxu0 %v73
    %v166 = vpop.f32.mrb[0].mxu0
    %v167 = vadd.f32 %v55, %v166
    %v168 = vpop.f32.mrb[0].mxu0
    %v169 = vadd.f32 %v59, %v168
    %170 = vdwg.mxu0
    %v171 = vmax.f32 %v149, 0.0
    %v172 = vmax.f32 %v151, 0.0
    %v173 = vmax.f32 %v155, 0.0
    %v174 = vmax.f32 %v157, 0.0
    %v175 = vmax.f32 %v161, 0.0
    %v176 = vmax.f32 %v163, 0.0
    %v177 = vmax.f32 %v167, 0.0
    %v178 = vmax.f32 %v169, 0.0
    %v179 = vld [vmem:[#allocation3] sm:$0xff]
    %v180 = vld [vmem:[#allocation3 + $0x8] sm:$0xff]
    %v181 = vld [vmem:[#allocation3 + $0x10] sm:$0xff]
    %v182 = vld [vmem:[#allocation3 + $0x18] sm:$0xff]
    %v183 = vld [vmem:[#allocation3 + $0x20] sm:$0xff]
    %v184 = vld [vmem:[#allocation3 + $0x28] sm:$0xff]
    %v185 = vld [vmem:[#allocation3 + $0x30] sm:$0xff]
    %v186 = vld [vmem:[#allocation3 + $0x38] sm:$0xff]
    %v187 = vld [vmem:[#allocation3 + $0x40] sm:$0xff]
    %v188 = vld [vmem:[#allocation3 + $0x48] sm:$0xff]
    %v189 = vld [vmem:[#allocation3 + $0x50] sm:$0xff]
    %v190 = vld [vmem:[#allocation3 + $0x58] sm:$0xff]
    %v191 = vld [vmem:[#allocation3 + $0x60] sm:$0xff]
    %v192 = vld [vmem:[#allocation3 + $0x68] sm:$0xff]
    %v193 = vld [vmem:[#allocation3 + $0x70] sm:$0xff]
    %v194 = vld [vmem:[#allocation3 + $0x78] sm:$0xff]
    %v195 = vld [vmem:[#allocation3 + $0x80] sm:$0xff]
    %v196 = vld [vmem:[#allocation3 + $0x88] sm:$0xff]
    %v197 = vld [vmem:[#allocation3 + $0x90] sm:$0xff]
    %v198 = vld [vmem:[#allocation3 + $0x98] sm:$0xff]
    %v199 = vld [vmem:[#allocation3 + $0xa0] sm:$0xff]
    %v200 = vld [vmem:[#allocation3 + $0xa8] sm:$0xff]
    %v201 = vld [vmem:[#allocation3 + $0xb0] sm:$0xff]
    %v202 = vld [vmem:[#allocation3 + $0xb8] sm:$0xff]
    %v203 = vld [vmem:[#allocation3 + $0xc0] sm:$0xff]
    %v204 = vld [vmem:[#allocation3 + $0xc8] sm:$0xff]
    %v205 = vld [vmem:[#allocation3 + $0xd0] sm:$0xff]
    %v206 = vld [vmem:[#allocation3 + $0xd8] sm:$0xff]
    %v207 = vld [vmem:[#allocation3 + $0xe0] sm:$0xff]
    %v208 = vld [vmem:[#allocation3 + $0xe8] sm:$0xff]
    %v209 = vld [vmem:[#allocation3 + $0xf0] sm:$0xff]
    %v210 = vld [vmem:[#allocation3 + $0xf8] sm:$0xff]
    %v211 = vld [vmem:[#allocation3 + $0x100] sm:$0xff]
    %v212 = vld [vmem:[#allocation3 + $0x108] sm:$0xff]
    %v213 = vld [vmem:[#allocation3 + $0x110] sm:$0xff]
    %v214 = vld [vmem:[#allocation3 + $0x118] sm:$0xff]
    %v215 = vld [vmem:[#allocation3 + $0x120] sm:$0xff]
    %v216 = vld [vmem:[#allocation3 + $0x128] sm:$0xff]
    %v217 = vld [vmem:[#allocation3 + $0x130] sm:$0xff]
    %v218 = vld [vmem:[#allocation3 + $0x138] sm:$0xff]
    %v219 = vld [vmem:[#allocation3 + $0x140] sm:$0xff]
    %v220 = vld [vmem:[#allocation3 + $0x148] sm:$0xff]
    %v221 = vld [vmem:[#allocation3 + $0x150] sm:$0xff]
    %v222 = vld [vmem:[#allocation3 + $0x158] sm:$0xff]
    %v223 = vld [vmem:[#allocation3 + $0x160] sm:$0xff]
    %v224 = vld [vmem:[#allocation3 + $0x168] sm:$0xff]
    %v225 = vld [vmem:[#allocation3 + $0x170] sm:$0xff]
    %v226 = vld [vmem:[#allocation3 + $0x178] sm:$0xff]
    %v227 = vld [vmem:[#allocation3 + $0x180] sm:$0xff]
    %v228 = vld [vmem:[#allocation3 + $0x188] sm:$0xff]
    %v229 = vld [vmem:[#allocation3 + $0x190] sm:$0xff]
    %v230 = vld [vmem:[#allocation3 + $0x198] sm:$0xff]
    %v231 = vld [vmem:[#allocation3 + $0x1a0] sm:$0xff]
    %v232 = vld [vmem:[#allocation3 + $0x1a8] sm:$0xff]
    %v233 = vld [vmem:[#allocation3 + $0x1b0] sm:$0xff]
    %v234 = vld [vmem:[#allocation3 + $0x1b8] sm:$0xff]
    %v235 = vld [vmem:[#allocation3 + $0x1c0] sm:$0xff]
    %v236 = vld [vmem:[#allocation3 + $0x1c8] sm:$0xff]
    %v237 = vld [vmem:[#allocation3 + $0x1d0] sm:$0xff]
    %v238 = vld [vmem:[#allocation3 + $0x1d8] sm:$0xff]
    %v239 = vld [vmem:[#allocation3 + $0x1e0] sm:$0xff]
    %v240 = vld [vmem:[#allocation3 + $0x1e8] sm:$0xff]
    %v241 = vld [vmem:[#allocation3 + $0x1f0] sm:$0xff]
    %v242 = vld [vmem:[#allocation3 + $0x1f8] sm:$0xff]
    %v243 = vld [vmem:[%s4] sm:$0x3]
    %v245 = vlaneseq
    %v246 = vshrl.u32 %v245, 7
    %v247 = vsub.s32 0, %v246
    %v248 = vrot.slane %v243, %v247
    %v249 = vlaneseq
    %v250 = vshrl.u32 %v249, 7
    %v251 = vsub.s32 1, %v250
    %v252 = vrot.slane %v243, %v251
    %255 = vmatprep.subr.mxu0 %v180
    %256 = vmatpush1.msra.mxu0 %v179
    %257 = vmatprep.subr.mxu0 %v182
    %258 = vmatpush1.msra.mxu0 %v181
    %259 = vmatprep.subr.mxu0 %v184
    %260 = vmatpush1.msra.mxu0 %v183
    %261 = vmatprep.subr.mxu0 %v186
    %262 = vmatpush1.msra.mxu0 %v185
    %263 = vmatprep.subr.mxu0 %v188
    %264 = vmatpush1.msra.mxu0 %v187
    %265 = vmatprep.subr.mxu0 %v190
    %266 = vmatpush1.msra.mxu0 %v189
    %267 = vmatprep.subr.mxu0 %v192
    %268 = vmatpush1.msra.mxu0 %v191
    %269 = vmatprep.subr.mxu0 %v194
    %270 = vmatpush1.msra.mxu0 %v193
    %271 = vmatprep.subr.mxu0 %v196
    %272 = vmatpush1.msra.mxu0 %v195
    %273 = vmatprep.subr.mxu0 %v198
    %274 = vmatpush1.msra.mxu0 %v197
    %275 = vmatprep.subr.mxu0 %v200
    %276 = vmatpush1.msra.mxu0 %v199
    %277 = vmatprep.subr.mxu0 %v202
    %278 = vmatpush1.msra.mxu0 %v201
    %279 = vmatprep.subr.mxu0 %v204
    %280 = vmatpush1.msra.mxu0 %v203
    %281 = vmatprep.subr.mxu0 %v206
    %282 = vmatpush1.msra.mxu0 %v205
    %283 = vmatprep.subr.mxu0 %v208
    %284 = vmatpush1.msra.mxu0 %v207
    %285 = vmatprep.subr.mxu0 %v210
    %286 = vmatpush1.msra.mxu0 %v209
    %287 = vmatprep.subr.mxu0 %v212
    %288 = vmatpush1.msra.mxu0 %v211
    %289 = vmatprep.subr.mxu0 %v214
    %290 = vmatpush1.msra.mxu0 %v213
    %291 = vmatprep.subr.mxu0 %v216
    %292 = vmatpush1.msra.mxu0 %v215
    %293 = vmatprep.subr.mxu0 %v218
    %294 = vmatpush1.msra.mxu0 %v217
    %295 = vmatprep.subr.mxu0 %v220
    %296 = vmatpush1.msra.mxu0 %v219
    %297 = vmatprep.subr.mxu0 %v222
    %298 = vmatpush1.msra.mxu0 %v221
    %299 = vmatprep.subr.mxu0 %v224
    %300 = vmatpush1.msra.mxu0 %v223
    %301 = vmatprep.subr.mxu0 %v226
    %302 = vmatpush1.msra.mxu0 %v225
    %303 = vmatprep.subr.mxu0 %v228
    %304 = vmatpush1.msra.mxu0 %v227
    %305 = vmatprep.subr.mxu0 %v230
    %306 = vmatpush1.msra.mxu0 %v229
    %307 = vmatprep.subr.mxu0 %v232
    %308 = vmatpush1.msra.mxu0 %v231
    %309 = vmatprep.subr.mxu0 %v234
    %310 = vmatpush1.msra.mxu0 %v233
    %311 = vmatprep.subr.mxu0 %v236
    %312 = vmatpush1.msra.mxu0 %v235
    %313 = vmatprep.subr.mxu0 %v238
    %314 = vmatpush1.msra.mxu0 %v237
    %315 = vmatprep.subr.mxu0 %v240
    %316 = vmatpush1.msra.mxu0 %v239
    %317 = vmatprep.subr.mxu0 %v242
    %318 = vmatpush1.msra.mxu0 %v241
    %319 = vmatprep.mubr.f32.mxu0 %v172
    %320 = vmatmul.mubr.f32.gmra.mrb[0].mxu0 %v171
    %v321 = vpop.f32.mrb[0].mxu0
    %v322 = vadd.f32 %v248, %v321
    %v323 = vpop.f32.mrb[0].mxu0
    %v324 = vadd.f32 %v252, %v323
    %325 = vmatprep.mubr.f32.mxu0 %v174
    %326 = vmatmul.mubr.f32.gmra.mrb[0].mxu0 %v173
    %v327 = vpop.f32.mrb[0].mxu0
    %v328 = vadd.f32 %v248, %v327
    %v329 = vpop.f32.mrb[0].mxu0
    %v330 = vadd.f32 %v252, %v329
    %331 = vmatprep.mubr.f32.mxu0 %v176
    %332 = vmatmul.mubr.f32.gmra.mrb[0].mxu0 %v175
    %v333 = vpop.f32.mrb[0].mxu0
    %v334 = vadd.f32 %v248, %v333
    %v335 = vpop.f32.mrb[0].mxu0
    %v336 = vadd.f32 %v252, %v335
    %337 = vmatprep.mubr.f32.mxu0 %v178
    %338 = vmatmul.mubr.f32.gmra.mrb[0].mxu0 %v177
    %v339 = vpop.f32.mrb[0].mxu0
    %v340 = vadd.f32 %v248, %v339
    %v341 = vpop.f32.mrb[0].mxu0
    %v342 = vadd.f32 %v252, %v341
    %343 = vdwg.mxu0
    %v344 = vmax.f32 %v322, 0.0
    %v345 = vmax.f32 %v324, 0.0
    %v346 = vmax.f32 %v328, 0.0
    %v347 = vmax.f32 %v330, 0.0
    %v348 = vmax.f32 %v334, 0.0
    %v349 = vmax.f32 %v336, 0.0
    %v350 = vmax.f32 %v340, 0.0
    %v351 = vmax.f32 %v342, 0.0
    %v352 = vld [vmem:[%s5] sm:$0x3]
    %v354 = vlaneseq
    %v355 = vshrl.u32 %v354, 7
    %v356 = vsub.s32 0, %v355
    %v357 = vrot.slane %v352, %v356
    %v358 = vlaneseq
    %v359 = vshrl.u32 %v358, 7
    %v360 = vsub.s32 1, %v359
    %v361 = vrot.slane %v352, %v360
    %v364 = vmul.f32 %v344, %v357
    %v365 = vmul.f32 %v345, %v361
    %v366 = vmul.f32 %v346, %v357
    %v367 = vmul.f32 %v347, %v361
    %v368 = vmul.f32 %v348, %v357
    %v369 = vmul.f32 %v349, %v361
    %v370 = vmul.f32 %v350, %v357
    %v371 = vmul.f32 %v351, %v361
    %v372 = vadd.f32 %v364, %v365
    %373 = vadd.xlane.f32.xlu0 %v372
    %v374 = vpop.xlane.xlu0 %373
    %v375 = vadd.f32 %v366, %v367
    %376 = vadd.xlane.f32.xlu0 %v375
    %v377 = vpop.xlane.xlu0 %376
    %v378 = vadd.f32 %v368, %v369
    %379 = vadd.xlane.f32.xlu0 %v378
    %v380 = vpop.xlane.xlu0 %379
    %v381 = vadd.f32 %v370, %v371
    %382 = vadd.xlane.f32.xlu0 %v381
    %v383 = vpop.xlane.xlu0 %382
    %v384 = vld [vmem:[#allocation2] sm:$0x1]
    %v386 = vlaneseq
    %v387 = vshrl.u32 %v386, 7
    %v388 = vsub.s32 0, %v387
    %v389 = vrot.slane %v384, %v388
    %v391 = vadd.f32 %v374, %v389
    %v392 = vadd.f32 %v377, %v389
    %v393 = vadd.f32 %v380, %v389
    %v394 = vadd.f32 %v383, %v389
    %vm395 = vcmask 7168
    %396 = vst.msk [vmem:[%s7] sm:$0xff] %vm395, %v391
    %397 = vst.msk [vmem:[%s7 + $0x8] sm:$0xff] %vm395, %v392
    %398 = vst.msk [vmem:[%s7 + $0x10] sm:$0xff] %vm395, %v393
    %399 = vst.msk [vmem:[%s7 + $0x18] sm:$0xff] %vm395, %v394
    // Predicated region
    $region34: #{tpu_custom_call.1} parent=1 // pred_check
      _
    $region35: #{tpu_custom_call.1} parent=1 // pred_check_branch
      %401 = sbr.rel (0) target = $region37
    $region36: #{tpu_custom_call.1} parent=1 // pred_region
      _
    $region37: #{tpu_custom_call.1} parent=1 // pred_fallthru
      _
    // Predicated region
    $region38: #{tpu_custom_call.1} parent=1 // pred_check
      _
    $region39: #{tpu_custom_call.1} parent=1 // pred_check_branch
      %403 = sbr.rel (0) target = $region41
    $region40: #{tpu_custom_call.1} parent=1 // pred_region
      _
    $region41: #{tpu_custom_call.1} parent=1 // pred_fallthru
      _
    %404 = vsyncpa [#allocation4], 1

</llo_original>
